<compile_context>
chip_gen: v5e
topology: v5e:2x2
jax: 0.10.0
libtpu: 0.0.40
codegen_flags: <defaults>
</compile_context>

<pallas_src>
import math

import jax
import jax.numpy as jnp
from jax.experimental import pallas as pl
from jax.experimental.pallas import tpu as pltpu

_LANES = 128


def _round_up(x: int, m: int) -> int:
    return ((x + m - 1) // m) * m


def _canon_map_dtype(x):
    """Keep mask / weight maps in a cheap dtype the kernel can stream."""
    x = jnp.asarray(x)
    if x.dtype == jnp.bool_:
        return x.astype(jnp.uint8)
    if jnp.issubdtype(x.dtype, jnp.floating) or jnp.issubdtype(x.dtype, jnp.integer):
        return x
    return x.astype(jnp.float32)


def _vmem_budget_bytes() -> int:
    """Per-step working-set budget; generation aware with a safe default."""
    cap = 128 << 20
    try:
        cap = int(getattr(pltpu.get_tpu_info(), "vmem_capacity_bytes", cap))
    except Exception:
        pass
    # v5e/v6e (128 MiB) -> 28 MiB/step; v7x (64 MiB) -> 24 MiB/step.
    return int(min(28 << 20, max(8 << 20, cap // 2 - (8 << 20))))


def _make_mae_kernel(C, TR, alpha, apply_sd, use_mask, edge_weight,
                     target_is_4d, lam=0.01):
    """Build the kernel body for a static configuration."""
    log_ew = (math.log(edge_weight)
              if (edge_weight is not None and edge_weight > 0) else None)
    use_reg = use_mask and alpha > 0
    use_ew = edge_weight is not None

    def fold(x):
        # (TR, 128) -> (8, 128) partial sums: sublane-grouping reshape + VPU adds.
        if TR == 8:
            return x
        return jnp.sum(x.reshape(TR // 8, 8, _LANES), axis=0)

    def kernel(*refs):
        idx = 0
        yhat_ref = refs[idx]; idx += 1                      # (C, TR, 128)
        tgt_ref = refs[idx]; idx += 1                       # (C, TR, 128) or (TR, 128)
        mask_ref = None
        wmap_ref = None
        if use_mask:
            mask_ref = refs[idx]; idx += 1                  # (TR, 128) native dtype
        if use_ew:
            wmap_ref = refs[idx]; idx += 1                  # (TR, 128) native dtype
        out_ref = refs[idx]                                 # (4, 8, 128) f32 partials

        @pl.when(pl.program_id(2) == 0)
        def _():
            out_ref[...] = jnp.zeros_like(out_ref)

        if not target_is_4d:
            tgt_common = tgt_ref[...].astype(jnp.float32)   # (TR, 128)
        if use_mask:
            mask = mask_ref[...].astype(jnp.float32)        # (TR, 128), 0/1

        # Channel-at-a-time accumulation keeps only one channel's f32 vregs live.
        mae_sum = jnp.zeros((TR, _LANES), jnp.float32)
        reg_sum = jnp.zeros((TR, _LANES), jnp.float32) if use_reg else None
        sd_sum = jnp.zeros((TR, _LANES), jnp.float32) if apply_sd else None
        for c in range(C):
            yc = yhat_ref[c].astype(jnp.float32)
            tc = tgt_ref[c].astype(jnp.float32) if target_is_4d else tgt_common
            mae_sum = mae_sum + jnp.abs(tc - yc)
            if use_reg:
                reg_sum = reg_sum + jnp.abs(yc)
            if apply_sd:
                sd_sum = sd_sum + yc * yc

        inv_c = jnp.float32(1.0 / C)
        term0 = mae_sum * inv_c                              # mean over channels
        if use_mask:
            term0 = term0 * mask
        if use_reg:
            reg = (reg_sum * inv_c) * (1.0 - mask)
        if apply_sd:
            sd = sd_sum * jnp.float32(0.5 * lam / C)

        if use_ew:
            wmap = wmap_ref[...].astype(jnp.float32)
            if log_ew is not None:
                ew = jnp.exp(wmap * jnp.float32(log_ew))     # EUP exp + VPU mul
            else:                                            # non-positive base
                ew = jnp.power(jnp.float32(edge_weight), wmap)
            term0 = term0 * ew
            if use_reg:
                reg = reg * ew
            if apply_sd:
                sd = sd * ew

        out_ref[0] = out_ref[0] + fold(term0)
        if use_reg:
            out_ref[1] = out_ref[1] + fold(reg)
        if apply_sd:
            out_ref[2] = out_ref[2] + fold(sd)
        if use_mask:
            out_ref[3] = out_ref[3] + fold(mask)

    return kernel


def mae_weighted(input_nchw, target, target_weight=None, mask=None, *,
                 alpha: float = 1e-4, apply_sd: bool = False,
                 apply_mask: bool = False, edge_weight=None, tile_rows=None):
    """JAX/Pallas equivalent of MAEWeighted.forward.

    input_nchw: (B, C, H, W) prediction map (any float dtype).
    target:     (B, H, W) or (B, C, H, W) ground truth.
    target_weight: (B, H, W) edge-weight map (needed iff edge_weight given).
    mask:       (B, H, W) mask (used iff apply_mask).
    Returns a scalar float32 loss.
    """
    yhat = jnp.asarray(input_nchw)
    if not jnp.issubdtype(yhat.dtype, jnp.floating):
        yhat = yhat.astype(jnp.float32)
    B, C, H, W = yhat.shape

    target = jnp.asarray(target)
    if target.dtype == jnp.bool_:
        target = target.astype(jnp.float32)
    if target.ndim == 3:
        if target.shape != (B, H, W):
            raise ValueError("Pred and target shapes must match.")
        target_is_4d = False
    elif target.shape == yhat.shape:
        target_is_4d = True
    else:
        raise ValueError("Pred and target shapes must match.")

    use_mask = apply_mask and mask is not None
    use_ew = edge_weight is not None
    if use_ew and target_weight is None:
        raise ValueError("edge_weight requires target_weight.")

    mask_arr = _canon_map_dtype(mask) if use_mask else None
    wmap_arr = _canon_map_dtype(target_weight) if use_ew else None

    # Byte bookkeeping (mem-bound kernel -> bytes decide everything).
    tgt_c = C if target_is_4d else 1
    itemsizes = [yhat.dtype.itemsize, target.dtype.itemsize]
    bytes_per_pixel = C * yhat.dtype.itemsize + tgt_c * target.dtype.itemsize
    if use_mask:
        itemsizes.append(mask_arr.dtype.itemsize)
        bytes_per_pixel += mask_arr.dtype.itemsize
    if use_ew:
        itemsizes.append(wmap_arr.dtype.itemsize)
        bytes_per_pixel += wmap_arr.dtype.itemsize
    bytes_per_row = _LANES * bytes_per_pixel

    # Row granularity: keep packed dtypes on their native sublane tiling
    # (f32 -> 8, bf16 -> 16, int8/uint8 -> 32 rows).
    row_gran = max(8 * (4 // min(4, it)) for it in itemsizes)

    N = H * W
    R0 = -(-N // _LANES)                           # rows before padding
    R8 = _round_up(max(R0, row_gran), row_gran)

    if tile_rows is not None:
        TR = int(tile_rows)
        if TR <= 0 or TR % row_gran != 0:
            raise ValueError(f"tile_rows must be a positive multiple of {row_gran}.")
    else:
        # Double-buffered streamed input + ~10 live f32 temporaries per row.
        per_row = 2 * bytes_per_row + 10 * _LANES * 4
        cap = max(row_gran, (_vmem_budget_bytes() // per_row) // row_gran * row_gran)
        if R8 <= cap:
            TR = R8
        else:
            divisors = [d for d in range(cap, row_gran - 1, -row_gran) if R8 % d == 0]
            TR = divisors[0] if divisors else cap

    n_tiles = -(-R8 // TR)
    # v7x dual-TensorCore: when B == 1 split the tile axis across a second
    # parallel grid axis so both cores get work.  No effect on v5e/v6e.
    n_splits = 2 if (B == 1 and n_tiles >= 2) else 1
    n_tiles = _round_up(n_tiles, n_splits)
    tps = n_tiles // n_splits
    R_pad = n_tiles * TR

    def to_rows(x, lead):
        # (..., H, W) -> (..., R_pad, 128); zero padding contributes 0 to all sums.
        flat = x.reshape(lead + (N,))
        pad = R_pad * _LANES - N
        if pad:
            flat = jnp.pad(flat, [(0, 0)] * len(lead) + [(0, pad)])
        return flat.reshape(lead + (R_pad, _LANES))

    row_map4 = lambda b, s, t: (b, 0, s * tps + t, 0)
    row_map3 = lambda b, s, t: (b, s * tps + t, 0)

    operands = [to_rows(yhat, (B, C)),
                to_rows(target, (B, C) if target_is_4d else (B,))]
    in_specs = [
        pl.BlockSpec((None, C, TR, _LANES), row_map4),
        (pl.BlockSpec((None, C, TR, _LANES), row_map4) if target_is_4d
         else pl.BlockSpec((None, TR, _LANES), row_map3)),
    ]
    if use_mask:
        operands.append(to_rows(mask_arr, (B,)))
        in_specs.append(pl.BlockSpec((None, TR, _LANES), row_map3))
    if use_ew:
        operands.append(to_rows(wmap_arr, (B,)))
        in_specs.append(pl.BlockSpec((None, TR, _LANES), row_map3))

    kernel = _make_mae_kernel(C, TR, alpha, apply_sd, use_mask, edge_weight,
                              target_is_4d)

    # Always set the scoped-VMEM limit explicitly (v5e default is 16 MiB).
    est = (2 * TR * bytes_per_row            # double-buffered streamed inputs
           + 10 * TR * _LANES * 4            # in-kernel f32 temporaries
           + 4 * 4 * 8 * _LANES * 4)         # output accumulator buffers
    vmem_limit = int(max(32 << 20, min(2 * est, 48 << 20)))
    vmem_limit = max(vmem_limit, est + (4 << 20))

    partials = pl.pallas_call(
        kernel,
        out_shape=jax.ShapeDtypeStruct((B, n_splits, 4, 8, _LANES), jnp.float32),
        grid_spec=pltpu.PrefetchScalarGridSpec(
            num_scalar_prefetch=0,
            grid=(B, n_splits, tps),
            in_specs=in_specs,
            out_specs=pl.BlockSpec((None, None, 4, 8, _LANES),
                                   lambda b, s, t: (b, s, 0, 0, 0)),
        ),
        compiler_params=pltpu.CompilerParams(
            dimension_semantics=("parallel", "parallel", "arbitrary"),
            vmem_limit_bytes=vmem_limit),
    )(*operands)

    # Final scalar combine (tiny, done in plain JAX):
    #   loss = [ sum(ew*mae*mask)/(mean(mask)+eps) + alpha*sum(ew*reg)
    #            + sum(ew*sd) ] / (B*H*W)
    totals = jnp.sum(partials, axis=(0, 1, 3, 4))          # (4,)
    npix = jnp.float32(B * H * W)
    if use_mask:
        loss_sum = (totals[0] / (totals[3] / npix + jnp.float32(1e-7))
                    + jnp.float32(alpha) * totals[1] + totals[2])
    else:
        loss_sum = totals[0] + totals[2]
    return loss_sum / npix


def _mae_weighted_ref(yhat, target, target_weight=None, mask=None, *,
                      alpha=1e-4, apply_sd=False, apply_mask=False,
                      edge_weight=None):
    """Pure-JAX reference mirroring the PyTorch forward, for verification."""
    yhat = jnp.asarray(yhat, jnp.float32)
    n_classes = yhat.shape[1]
    target = jnp.asarray(target, jnp.float32)
    if target.ndim == 3:
        target = jnp.repeat(target[:, None], n_classes, axis=1)
    loss = jnp.mean(jnp.abs(target - yhat), axis=1)
    if apply_mask and mask is not None:
        m = jnp.asarray(mask, jnp.float32)
        loss = loss * m
        loss = loss / (jnp.mean(m) + 1e-7)
        if alpha > 0:
            reg = jnp.mean((1.0 - m)[:, None] * jnp.abs(yhat), axis=1)
            loss = loss + alpha * reg
    if apply_sd:
        loss = loss + 0.01 / 2 * jnp.mean(yhat ** 2, axis=1)
    if edge_weight is not None:
        loss = loss * (edge_weight ** jnp.asarray(target_weight, jnp.float32))
    return jnp.mean(loss)


if __name__ == "__main__":
    key = jax.random.PRNGKey(0)
    ks = jax.random.split(key, 8)

    # Case A: default MAEWeighted() config, B=2 C=4 16x16 (auto tiling,
    # lane-folded plane, single row tile).
    B, C, H, W = 2, 4, 16, 16
    yhat = jax.random.normal(ks[0], (B, C, H, W), jnp.float32)
    target = jax.random.uniform(ks[1], (B, H, W), jnp.float32) * 2.0
    out_a = mae_weighted(yhat, target)
    jax.block_until_ready(out_a)
    ref_a = _mae_weighted_ref(yhat, target)
    assert jnp.allclose(out_a, ref_a, rtol=1e-5, atol=1e-6), (out_a, ref_a)

    # Case B: full config (bool mask, background reg, spectral decoupling,
    # edge weights) on a 72x72 image -> lane padding + 2 row tiles per batch
    # (exercises the per-(b,s) accumulator across grid steps).
    Hb = Wb = 72
    yhat_b = jax.random.normal(ks[2], (B, C, Hb, Wb), jnp.float32)
    target_b = jax.random.uniform(ks[3], (B, Hb, Wb), jnp.float32) * 2.0
    wmap_b = jax.random.uniform(ks[4], (B, Hb, Wb), jnp.float32)
    mask_b = jax.random.uniform(ks[5], (B, Hb, Wb)) > 0.5          # bool mask
    out_b = mae_weighted(yhat_b, target_b, target_weight=wmap_b, mask=mask_b,
                         alpha=1e-4, apply_sd=True, apply_mask=True,
                         edge_weight=1.1, tile_rows=32)
    jax.block_until_ready(out_b)
    ref_b = _mae_weighted_ref(yhat_b, target_b, target_weight=wmap_b,
                              mask=mask_b, alpha=1e-4, apply_sd=True,
                              apply_mask=True, edge_weight=1.1)
    assert jnp.allclose(out_b, ref_b, rtol=5e-5, atol=1e-6), (out_b, ref_b)

    # Case C: B=1 -> the row-tile axis is split across a second parallel grid
    # axis (v7x dual-TensorCore path), with mask + edge weights + padding.
    yc1 = jax.random.normal(ks[6], (1, 3, Hb, Wb), jnp.float32)
    tc1 = jax.random.uniform(ks[7], (1, Hb, Wb), jnp.float32) * 2.0
    wc1 = jax.random.uniform(ks[0], (1, Hb, Wb), jnp.float32)
    mc1 = jax.random.uniform(ks[1], (1, Hb, Wb)) > 0.3
    out_c = mae_weighted(yc1, tc1, target_weight=wc1, mask=mc1,
                         apply_mask=True, edge_weight=1.2, tile_rows=32)
    jax.block_until_ready(out_c)
    ref_c = _mae_weighted_ref(yc1, tc1, target_weight=wc1, mask=mc1,
                              apply_mask=True, edge_weight=1.2)
    assert jnp.allclose(out_c, ref_c, rtol=5e-5, atol=1e-6), (out_c, ref_c)

    # Case D: 4-D target (already matching prediction shape) + spectral dec.
    target4 = jax.random.uniform(ks[2], (B, C, H, W), jnp.float32) * 2.0
    out_d = mae_weighted(yhat, target4, apply_sd=True)
    jax.block_until_ready(out_d)
    ref_d = _mae_weighted_ref(yhat, target4, apply_sd=True)
    assert jnp.allclose(out_d, ref_d, rtol=1e-5, atol=1e-6), (out_d, ref_d)

    print("KERNEL_OK")
</pallas_src>

<mosaic_0001>
module attributes {stable_mosaic.version = 11 : i64} {
  func.func @kernel(%arg0: i32, %arg1: i32, %arg2: i32, %arg3: memref<1x4x8x128xf32, #tpu.memory_space<vmem>>, %arg4: memref<1x8x128xf32, #tpu.memory_space<vmem>>, %arg5: memref<1x1x4x8x128xf32, #tpu.memory_space<vmem>>) attributes {dimension_semantics = [#tpu.dimension_semantics<parallel>, #tpu.dimension_semantics<parallel>, #tpu.dimension_semantics<arbitrary>], iteration_bounds = array<i64: 2, 1, 1>, scalar_prefetch = 0 : i64, scratch_operands = 0 : i64, tpu.core_type = #tpu.core_type<tc>, window_params = [{transform_indices = @transform_0, window_bounds = array<i64: 1, 4, 8, 128>}, {transform_indices = @transform_1, window_bounds = array<i64: 1, 8, 128>}, {transform_indices = @transform_2, window_bounds = array<i64: 1, 1, 4, 8, 128>}]} {
    %c0_i32 = arith.constant 0 : i32
    %0 = arith.cmpi eq, %arg2, %c0_i32 : i32
    %1 = arith.extui %0 : i1 to i32
    %c0_i32_0 = arith.constant 0 : i32
    %2 = arith.cmpi ne, %1, %c0_i32_0 : i32
    scf.if %2 {
      %cst_27 = arith.constant 0.000000e+00 : f32
      %34 = vector.broadcast %cst_27 : f32 to vector<4x8x128xf32>
      %c0_28 = arith.constant 0 : index
      %c0_29 = arith.constant 0 : index
      %c0_30 = arith.constant 0 : index
      %c0_31 = arith.constant 0 : index
      %c0_32 = arith.constant 0 : index
      %35 = vector.load %arg5[%c0_28, %c0_29, %c0_30, %c0_31, %c0_32] : memref<1x1x4x8x128xf32, #tpu.memory_space<vmem>>, vector<1x1x4x8x128xf32>
      %36 = vector.shape_cast %35 : vector<1x1x4x8x128xf32> to vector<4x8x128xf32>
      %37 = vector.shape_cast %34 : vector<4x8x128xf32> to vector<1x1x4x8x128xf32>
      tpu.vector_store %arg5[%c0_28, %c0_29, %c0_30, %c0_31, %c0_32], %37 {strides = array<i32>} : memref<1x1x4x8x128xf32, #tpu.memory_space<vmem>>, vector<1x1x4x8x128xf32>,
    } else {
    }
    %c0 = arith.constant 0 : index
    %c0_1 = arith.constant 0 : index
    %c0_2 = arith.constant 0 : index
    %3 = vector.load %arg4[%c0, %c0_1, %c0_2] : memref<1x8x128xf32, #tpu.memory_space<vmem>>, vector<1x8x128xf32>
    %4 = vector.shape_cast %3 : vector<1x8x128xf32> to vector<8x128xf32>
    %cst = arith.constant 0.000000e+00 : f32
    %5 = vector.broadcast %cst : f32 to vector<8x128xf32>
    %c0_3 = arith.constant 0 : index
    %c0_4 = arith.constant 0 : index
    %c0_5 = arith.constant 0 : index
    %c0_6 = arith.constant 0 : index
    %6 = vector.load %arg3[%c0_3, %c0_4, %c0_5, %c0_6] : memref<1x4x8x128xf32, #tpu.memory_space<vmem>>, vector<1x1x8x128xf32>
    %7 = vector.shape_cast %6 : vector<1x1x8x128xf32> to vector<8x128xf32>
    %8 = arith.subf %4, %7 : vector<8x128xf32>
    %9 = math.absf %8 : vector<8x128xf32>
    %10 = arith.addf %5, %9 : vector<8x128xf32>
    %c0_7 = arith.constant 0 : index
    %c1 = arith.constant 1 : index
    %c0_8 = arith.constant 0 : index
    %c0_9 = arith.constant 0 : index
    %11 = vector.load %arg3[%c0_7, %c1, %c0_8, %c0_9] : memref<1x4x8x128xf32, #tpu.memory_space<vmem>>, vector<1x1x8x128xf32>
    %12 = vector.shape_cast %11 : vector<1x1x8x128xf32> to vector<8x128xf32>
    %13 = arith.subf %4, %12 : vector<8x128xf32>
    %14 = math.absf %13 : vector<8x128xf32>
    %15 = arith.addf %10, %14 : vector<8x128xf32>
    %c0_10 = arith.constant 0 : index
    %c2 = arith.constant 2 : index
    %c0_11 = arith.constant 0 : index
    %c0_12 = arith.constant 0 : index
    %16 = vector.load %arg3[%c0_10, %c2, %c0_11, %c0_12] : memref<1x4x8x128xf32, #tpu.memory_space<vmem>>, vector<1x1x8x128xf32>
    %17 = vector.shape_cast %16 : vector<1x1x8x128xf32> to vector<8x128xf32>
    %18 = arith.subf %4, %17 : vector<8x128xf32>
    %19 = math.absf %18 : vector<8x128xf32>
    %20 = arith.addf %15, %19 : vector<8x128xf32>
    %c0_13 = arith.constant 0 : index
    %c3 = arith.constant 3 : index
    %c0_14 = arith.constant 0 : index
    %c0_15 = arith.constant 0 : index
    %21 = vector.load %arg3[%c0_13, %c3, %c0_14, %c0_15] : memref<1x4x8x128xf32, #tpu.memory_space<vmem>>, vector<1x1x8x128xf32>
    %22 = vector.shape_cast %21 : vector<1x1x8x128xf32> to vector<8x128xf32>
    %23 = arith.subf %4, %22 : vector<8x128xf32>
    %24 = math.absf %23 : vector<8x128xf32>
    %25 = arith.addf %20, %24 : vector<8x128xf32>
    %cst_16 = arith.constant 2.500000e-01 : f32
    %26 = vector.broadcast %cst_16 : f32 to vector<8x128xf32>
    %27 = arith.mulf %25, %26 : vector<8x128xf32>
    %c0_17 = arith.constant 0 : index
    %c0_18 = arith.constant 0 : index
    %c0_19 = arith.constant 0 : index
    %c0_20 = arith.constant 0 : index
    %c0_21 = arith.constant 0 : index
    %28 = vector.load %arg5[%c0_17, %c0_18, %c0_19, %c0_20, %c0_21] : memref<1x1x4x8x128xf32, #tpu.memory_space<vmem>>, vector<1x1x1x8x128xf32>
    %29 = vector.shape_cast %28 : vector<1x1x1x8x128xf32> to vector<8x128xf32>
    %30 = arith.addf %29, %27 : vector<8x128xf32>
    %c0_22 = arith.constant 0 : index
    %c0_23 = arith.constant 0 : index
    %c0_24 = arith.constant 0 : index
    %c0_25 = arith.constant 0 : index
    %c0_26 = arith.constant 0 : index
    %31 = vector.load %arg5[%c0_22, %c0_23, %c0_24, %c0_25, %c0_26] : memref<1x1x4x8x128xf32, #tpu.memory_space<vmem>>, vector<1x1x1x8x128xf32>
    %32 = vector.shape_cast %31 : vector<1x1x1x8x128xf32> to vector<8x128xf32>
    %33 = vector.shape_cast %30 : vector<8x128xf32> to vector<1x1x1x8x128xf32>
    tpu.vector_store %arg5[%c0_22, %c0_23, %c0_24, %c0_25, %c0_26], %33 {strides = array<i32>} : memref<1x1x4x8x128xf32, #tpu.memory_space<vmem>>, vector<1x1x1x8x128xf32>,
    return
  }
  func.func @transform_0(%arg0: i32, %arg1: i32, %arg2: i32) -> (i32, i32, i32, i32) {
    %c1_i32 = arith.constant 1 : i32
    %0 = arith.muli %arg1, %c1_i32 : i32
    %1 = arith.addi %0, %arg2 : i32
    %c0_i32 = arith.constant 0 : i32
    %c0_i32_0 = arith.constant 0 : i32
    %c0_i32_1 = arith.constant 0 : i32
    return %arg0, %c0_i32, %1, %c0_i32_0 : i32, i32, i32, i32
  }
  func.func @transform_1(%arg0: i32, %arg1: i32, %arg2: i32) -> (i32, i32, i32) {
    %c1_i32 = arith.constant 1 : i32
    %0 = arith.muli %arg1, %c1_i32 : i32
    %1 = arith.addi %0, %arg2 : i32
    %c0_i32 = arith.constant 0 : i32
    %c0_i32_0 = arith.constant 0 : i32
    return %arg0, %1, %c0_i32 : i32, i32, i32
  }
  func.func @transform_2(%arg0: i32, %arg1: i32, %arg2: i32) -> (i32, i32, i32, i32, i32) {
    %c0_i32 = arith.constant 0 : i32
    %c0_i32_0 = arith.constant 0 : i32
    %c0_i32_1 = arith.constant 0 : i32
    %c0_i32_2 = arith.constant 0 : i32
    return %arg0, %arg1, %c0_i32, %c0_i32_0, %c0_i32_1 : i32, i32, i32, i32, i32
  }
}

</mosaic_0001>

<llo_original>
// kernel: tpu_custom_call.1
$region0: #{tpu_custom_call.1}
  #allocation0 [shape = 'u32[]', space=smem, size = 0x4, offset = 0x4, fixed_abs, tag = 'smem constant byte address 0x4 - core index']
  #allocation1 [shape = 'u32[72,128]{1,0:T(1,128)}', space=vmem, size = 0x9000, scoped, tag = 'internal scratch']
  %s0 = inlined_call_operand.hbm [shape: f32[2,4,8,128], index: 0, kind: input, shape index: {}]
  %s1 = inlined_call_operand.hbm [shape: f32[2,8,128], index: 1, kind: input, shape index: {}]
  %s2 = inlined_call_operand.hbm [shape: f32[2,1,4,8,128], index: 2, kind: output, shape index: {}]
  %s3 = sld [smem:[#allocation0]]
  $region53: #{tpu_custom_call.1} parent=0
    _
  %s5 = ssub.s32 1, %s3
  %s6 = scalar_select 0, %s5, %s3
  $region1: #{tpu_custom_call.1} parent=0
    #allocation2 [shape = 'u8[32768]{0}', space=vmem, size = 0x8000, scoped, tag = 'input window, operand 0']
    #allocation3 [shape = 's32[2]{0}', space=sflag, size = 0x8, scoped, tag = 'scoped memory for tpu_custom_call.1']
    #allocation4 [shape = 's32[2]{0}', space=sflag, size = 0x8, scoped, tag = 'scoped memory for tpu_custom_call.1']
    #allocation5 [shape = 'u8[8192]{0}', space=vmem, size = 0x2000, scoped, tag = 'input window, operand 1']
    #allocation6 [shape = 's32[2]{0}', space=sflag, size = 0x8, scoped, tag = 'scoped memory for tpu_custom_call.1']
    #allocation7 [shape = 'u8[32768]{0}', space=vmem, size = 0x8000, scoped, tag = 'output window, operand 0']
    %7 = vsyncpa [#allocation3], 0
    %s8 = scalar_lea.sflag [#allocation3], 1
    %9 = vsyncpa %s8, 0
    %10 = vsyncpa [#allocation6], 0
    %s11 = scalar_lea.sflag [#allocation6], 1
    %12 = vsyncpa %s11, 0
    %13 = vsyncpa [#allocation4], 0
    %s14 = scalar_lea.sflag [#allocation4], 1
    %15 = vsyncpa %s14, 0
    loop: start=0, step=1, limit=4
    $region2: #{tpu_custom_call.1} parent=1 // loop_pre_header
      _
    $region3: #{tpu_custom_call.1} parent=1 // loop_header
      %s17 = sphi 0, %s21
      %p18 = scmp.ge.s32.totalorder %s17, 4
      %s24 = sphi 0, %s43
      %s25 = sphi 0, %s39
      %s26 = sphi 0, %s35
      %s27 = sphi 0, %s24
      %s28 = sphi 0, %s25
      %s29 = sphi 0, %s26
      %s30 = sphi 0, %s27
      %s31 = sphi 0, %s28
      %s32 = sphi 0, %s29
      %s50 = sphi 0, %s52
      %s53 = sphi 0, %s50
      %s54 = sphi 0, %s53
      %s70 = sphi 0, %s54
      %s80 = sphi 0, %s82
      %s83 = sphi 0, %s80
      %s84 = sphi 0, %s83
      %s100 = sphi 0, %s84
      %s108 = sphi 0, %s110
      %s111 = sphi 0, %s108
      %s112 = sphi 0, %s111
      %s128 = sphi 0, %s112
    $region4: #{tpu_custom_call.1} parent=1 // loop_header_branch
      %20 = sbr.rel (%p18) target = $region8
    $region5: #{tpu_custom_call.1} parent=1 // loop_body
      %s22 = ssub.s32 %s17, 1
      %s23 = ssub.s32 %s17, 2
      %s33 = sadd.s32 1, %s26
      %p34 = scmp.ge.s32.totalorder %s33, 1
      %s35 = scalar_select %p34, 0, %s33
      %s36 = sadd.s32 1, %s25
      %s37 = scalar_select %p34, %s36, %s25
      %p38 = scmp.ge.s32.totalorder %s37, 1
      %s39 = scalar_select %p38, 0, %s37
      %s40 = sadd.s32 1, %s24
      %s41 = scalar_select %p38, %s40, %s24
      %p42 = scmp.ge.s32.totalorder %s41, 2
      %s43 = scalar_select %p42, 0, %s41
      %s44 = sadd.s32 %s25, %s26
      %s45 = sadd.s32 %s39, %s35
      %s46 = ssub.s32 %s24, %s43
      %s47 = ssub.s32 %s44, %s45
      %s48 = sor.u32 %s46, %s47
      %p49 = scmp.eq.s32.totalorder %s48, 0
      %s51 = sadd.s32 %s50, 1
      %s52 = scalar_select %p49, %s50, %s51
      %p55 = pneg %p49
      %p56 = scmp.eq.s32.totalorder %s17, 1
      %p57 = por %p55, %p56
      %p58 = scmp.ne.s32.totalorder %s50, %s53
      %p59 = scmp.eq.s32.totalorder %s17, 0
      %p60 = por %p58, %p59
      %p61 = scmp.ne.s32.totalorder %s50, %s53
      %p62 = scmp.eq.s32.totalorder %s22, 1
      %p63 = por %p61, %p62
      %p64 = scmp.ne.s32.totalorder %s53, %s54
      %p65 = scmp.eq.s32.totalorder %s22, 0
      %p66 = por %p64, %p65
      %p67 = scmp.ne.s32.totalorder %s53, %s54
      %p68 = scmp.eq.s32.totalorder %s23, 1
      %p69 = por %p67, %p68
      %p71 = scmp.ne.s32.totalorder %s54, %s70
      %p72 = scmp.eq.s32.totalorder %s23, 0
      %p73 = por %p71, %p72
      %s74 = sadd.s32 %s25, %s26
      %s75 = sadd.s32 %s39, %s35
      %s76 = ssub.s32 %s24, %s43
      %s77 = ssub.s32 %s74, %s75
      %s78 = sor.u32 %s76, %s77
      %p79 = scmp.eq.s32.totalorder %s78, 0
      %s81 = sadd.s32 %s80, 1
      %s82 = scalar_select %p79, %s80, %s81
      %p85 = pneg %p79
      %p86 = scmp.eq.s32.totalorder %s17, 1
      %p87 = por %p85, %p86
      %p88 = scmp.ne.s32.totalorder %s80, %s83
      %p89 = scmp.eq.s32.totalorder %s17, 0
      %p90 = por %p88, %p89
      %p91 = scmp.ne.s32.totalorder %s80, %s83
      %p92 = scmp.eq.s32.totalorder %s22, 1
      %p93 = por %p91, %p92
      %p94 = scmp.ne.s32.totalorder %s83, %s84
      %p95 = scmp.eq.s32.totalorder %s22, 0
      %p96 = por %p94, %p95
      %p97 = scmp.ne.s32.totalorder %s83, %s84
      %p98 = scmp.eq.s32.totalorder %s23, 1
      %p99 = por %p97, %p98
      %p101 = scmp.ne.s32.totalorder %s84, %s100
      %p102 = scmp.eq.s32.totalorder %s23, 0
      %p103 = por %p101, %p102
      %s104 = ssub.s32 %s24, %s43
      %s105 = ssub.s32 %s25, %s39
      %s106 = sor.u32 %s104, %s105
      %p107 = scmp.eq.s32.totalorder %s106, 0
      %s109 = sadd.s32 %s108, 1
      %s110 = scalar_select %p107, %s108, %s109
      %p113 = pneg %p107
      %p114 = scmp.eq.s32.totalorder %s17, 1
      %p115 = por %p113, %p114
      %p116 = scmp.ne.s32.totalorder %s108, %s111
      %p117 = scmp.eq.s32.totalorder %s17, 0
      %p118 = por %p116, %p117
      %p119 = scmp.ne.s32.totalorder %s108, %s111
      %p120 = scmp.eq.s32.totalorder %s22, 1
      %p121 = por %p119, %p120
      %p122 = scmp.ne.s32.totalorder %s111, %s112
      %p123 = scmp.eq.s32.totalorder %s22, 0
      %p124 = por %p122, %p123
      %p125 = scmp.ne.s32.totalorder %s111, %s112
      %p126 = scmp.eq.s32.totalorder %s23, 1
      %p127 = por %p125, %p126
      %p129 = scmp.ne.s32.totalorder %s112, %s128
      %p130 = scmp.eq.s32.totalorder %s23, 0
      %p131 = por %p129, %p130
      %p132 = scmp.le.s32.totalorder 1, %s17
      %p133 = scmp.lt.s32.totalorder %s17, 3
      %p134 = pnand %p132, %p133
      %p135 = pneg %p134
      // Predicated region
      $region9: #{tpu_custom_call.1} parent=5 // pred_check
        _
      $region10: #{tpu_custom_call.1} parent=5 // pred_check_branch
        %137 = sbr.rel (%p134) target = $region12
      $region11: #{tpu_custom_call.1} parent=5 // pred_region
        %s138 = ssub.s32 %s17, 1
      $region12: #{tpu_custom_call.1} parent=5 // pred_fallthru
        _
      %p139 = scmp.lt.s32.totalorder %s17, 2
      // Predicated region
      $region13: #{tpu_custom_call.1} parent=5 // pred_check
        %p140 = pneg %p139
      $region14: #{tpu_custom_call.1} parent=5 // pred_check_branch
        %142 = sbr.rel (%p140) target = $region16
      $region15: #{tpu_custom_call.1} parent=5 // pred_region
        // Predicated region
        $region17: #{tpu_custom_call.1} parent=15 // pred_check
          %p143 = pneg %p60
        $region18: #{tpu_custom_call.1} parent=15 // pred_check_branch
          %145 = sbr.rel (%p143) target = $region20
        $region19: #{tpu_custom_call.1} parent=15 // pred_region
          %s146 = sand.u32 %s50, 1
          %s147 = scalar_lea.sflag [#allocation3], %s146
          %s148 = sand.u32 %s50, 1
          %s149 = smul.addr %s148, 32
          %s150 = scalar_lea.vmem [#allocation2], %s149
          %s151 = sadd.s32 %s25, %s26
          %153 = vsyncadd %s147, 0
          %s154 = smul.addr %s24, 4
          %s155 = sadd.s32 %s151, %s154
          %s156 = smul.addr %s155, 8
          %s157 = scalar_lea.hbm %s0, %s156
          %s158 = sshll.u32 %s157, 4
          %s159 = int_to_ptr.hbm [resolvable:$true] %s158
          %s160 = sshll.u32 %s150, 4
          %s161 = int_to_ptr.vmem [resolvable:$true] %s160
          %166 = dma.hbm_to_vmem [thread:$0]  %s159, 512, %s161, %s147, 128, 128, 8
        $region20: #{tpu_custom_call.1} parent=15 // pred_fallthru
          _
        // Predicated region
        $region21: #{tpu_custom_call.1} parent=15 // pred_check
          %p167 = pneg %p90
        $region22: #{tpu_custom_call.1} parent=15 // pred_check_branch
          %169 = sbr.rel (%p167) target = $region24
        $region23: #{tpu_custom_call.1} parent=15 // pred_region
          %s170 = sand.u32 %s80, 1
          %s171 = scalar_lea.sflag [#allocation6], %s170
          %s172 = sand.u32 %s80, 1
          %s173 = smul.addr %s172, 8
          %s174 = scalar_lea.vmem [#allocation5], %s173
          %s175 = sadd.s32 %s25, %s26
          %177 = vsyncadd %s171, 0
          %s178 = sadd.s32 %s175, %s24
          %s179 = smul.addr %s178, 8
          %s180 = scalar_lea.hbm %s1, %s179
          %s182 = sshll.u32 %s180, 4
          %s183 = int_to_ptr.hbm [resolvable:$true] %s182
          %s184 = sshll.u32 %s174, 4
          %s185 = int_to_ptr.vmem [resolvable:$true] %s184
          %187 = dma.hbm_to_vmem [thread:$0]  %s183, 128, %s185, %s171
        $region24: #{tpu_custom_call.1} parent=15 // pred_fallthru
          _
      $region16: #{tpu_custom_call.1} parent=5 // pred_fallthru
        _
      %p188 = scmp.le.s32.totalorder 1, %s17
      %p189 = scmp.lt.s32.totalorder %s17, 3
      %p190 = pnand %p188, %p189
      %p191 = pneg %p190
      // Predicated region
      $region25: #{tpu_custom_call.1} parent=5 // pred_check
        _
      $region26: #{tpu_custom_call.1} parent=5 // pred_check_branch
        %193 = sbr.rel (%p190) target = $region28
      $region27: #{tpu_custom_call.1} parent=5 // pred_region
        %s194 = ssub.s32 %s17, 1
        %s195 = sand.u32 %s53, 1
        %s196 = scalar_lea.sflag [#allocation3], %s195
        %s197 = sand.u32 %s53, 1
        %s198 = smul.addr %s197, 32
        %s199 = scalar_lea.vmem [#allocation2], %s198
        // Predicated region
        $region29: #{tpu_custom_call.1} parent=27 // pred_check
          %p200 = pneg %p66
        $region30: #{tpu_custom_call.1} parent=27 // pred_check_branch
          %202 = sbr.rel (%p200) target = $region32
        $region31: #{tpu_custom_call.1} parent=27 // pred_region
          %204 = dma.done %s196, 512
        $region32: #{tpu_custom_call.1} parent=27 // pred_fallthru
          _
        %s205 = sand.u32 %s83, 1
        %s206 = scalar_lea.sflag [#allocation6], %s205
        %s207 = sand.u32 %s83, 1
        %s208 = smul.addr %s207, 8
        %s209 = scalar_lea.vmem [#allocation5], %s208
        // Predicated region
        $region33: #{tpu_custom_call.1} parent=27 // pred_check
          %p210 = pneg %p96
        $region34: #{tpu_custom_call.1} parent=27 // pred_check_branch
          %212 = sbr.rel (%p210) target = $region36
        $region35: #{tpu_custom_call.1} parent=27 // pred_region
          %214 = dma.done %s206, 128
        $region36: #{tpu_custom_call.1} parent=27 // pred_fallthru
          _
        %s215 = sand.u32 %s53, 1
        %s216 = scalar_lea.sflag [#allocation3], %s215
        %s217 = sand.u32 %s53, 1
        %s218 = smul.addr %s217, 32
        %s219 = scalar_lea.vmem [#allocation2], %s218
        %p220 = pneg %p66
        %p221 = pneg %p63
        %s222 = sand.u32 %s83, 1
        %s223 = scalar_lea.sflag [#allocation6], %s222
        %s224 = sand.u32 %s83, 1
        %s225 = smul.addr %s224, 8
        %s226 = scalar_lea.vmem [#allocation5], %s225
        %p227 = pneg %p96
        %p228 = pneg %p93
        %p229 = pneg %p124
        %p230 = pneg %p121
        %s231 = sand.u32 %s111, 1
        %s232 = scalar_lea.sflag [#allocation4], %s231
        %s233 = sand.u32 %s111, 1
        %s234 = smul.addr %s233, 32
        %s235 = scalar_lea.vmem [#allocation7], %s234
        %s236 = sadd.s32 %s28, %s29
        %s237 = sadd.s32 %s28, %s29
        %p238 = scmp.eq.s32.totalorder %s29, 0
        // Predicated region
        $region37: #{tpu_custom_call.1} parent=27 // pred_check
          %p239 = pneg %p238
        $region38: #{tpu_custom_call.1} parent=27 // pred_check_branch
          %241 = sbr.rel (%p239) target = $region40
        $region39: #{tpu_custom_call.1} parent=27 // pred_region
          %242 = vst [vmem:[%s235] sm:$0xff] 0.0
          %243 = vst [vmem:[%s235 + $0x8] sm:$0xff] 0.0
          %244 = vst [vmem:[%s235 + $0x10] sm:$0xff] 0.0
          %245 = vst [vmem:[%s235 + $0x18] sm:$0xff] 0.0
        $region40: #{tpu_custom_call.1} parent=27 // pred_fallthru
          _
        %v246 = vld [vmem:[%s209] sm:$0xff]
        %v247 = vld [vmem:[%s199] sm:$0xff]
        %v248 = vsub.f32 %v246, %v247
        %v249 = vand.u32 2147483647, %v248
        %v250 = vadd.f32 %v249, 0.0
        %s251 = scalar_lea.vmem %s199, 8 [#allocation2]
        %v252 = vld [vmem:[%s251] sm:$0xff]
        %v253 = vsub.f32 %v246, %v252
        %v254 = vand.u32 2147483647, %v253
        %v255 = vadd.f32 %v250, %v254
        %s256 = scalar_lea.vmem %s199, 16 [#allocation2]
        %v257 = vld [vmem:[%s256] sm:$0xff]
        %v258 = vsub.f32 %v246, %v257
        %v259 = vand.u32 2147483647, %v258
        %v260 = vadd.f32 %v255, %v259
        %s261 = scalar_lea.vmem %s199, 24 [#allocation2]
        %v262 = vld [vmem:[%s261] sm:$0xff]
        %v263 = vsub.f32 %v246, %v262
        %v264 = vand.u32 2147483647, %v263
        %v265 = vadd.f32 %v260, %v264
        %v266 = vmul.f32 %v265, 0.25
        %v267 = vld [vmem:[%s235] sm:$0xff]
        %v268 = vadd.f32 %v267, %v266
        %269 = vst [vmem:[%s235] sm:$0xff] %v268
        %s270 = sand.u32 %s111, 1
        %s271 = scalar_lea.sflag [#allocation4], %s270
        %s272 = sand.u32 %s111, 1
        %s273 = smul.addr %s272, 32
        %s274 = scalar_lea.vmem [#allocation7], %s273
        // Predicated region
        $region41: #{tpu_custom_call.1} parent=27 // pred_check
          %p275 = pneg %p121
        $region42: #{tpu_custom_call.1} parent=27 // pred_check_branch
          %277 = sbr.rel (%p275) target = $region44
        $region43: #{tpu_custom_call.1} parent=27 // pred_region
          %279 = vsyncadd %s271, 0
          %s280 = smul.addr %s28, 4
          %s281 = smul.addr %s27, 4
          %s282 = sadd.s32 %s280, %s281
          %s283 = smul.addr %s282, 8
          %s284 = scalar_lea.hbm %s2, %s283
          %s285 = sshll.u32 %s274, 4
          %s286 = int_to_ptr.vmem [resolvable:$true] %s285
          %s287 = sshll.u32 %s284, 4
          %s288 = int_to_ptr.hbm [resolvable:$true] %s287
          %293 = dma.vmem_to_hbm [thread:$0]  %s286, 512, %s288, %s271, 128, 128, 8
        $region44: #{tpu_custom_call.1} parent=27 // pred_fallthru
          _
      $region28: #{tpu_custom_call.1} parent=5 // pred_fallthru
        _
      %p294 = scmp.le.s32.totalorder 2, %s17
      // Predicated region
      $region45: #{tpu_custom_call.1} parent=5 // pred_check
        %p295 = pneg %p294
      $region46: #{tpu_custom_call.1} parent=5 // pred_check_branch
        %297 = sbr.rel (%p295) target = $region48
      $region47: #{tpu_custom_call.1} parent=5 // pred_region
        %s298 = ssub.s32 %s17, 2
        // Predicated region
        $region49: #{tpu_custom_call.1} parent=47 // pred_check
          %p299 = pneg %p127
        $region50: #{tpu_custom_call.1} parent=47 // pred_check_branch
          %301 = sbr.rel (%p299) target = $region52
        $region51: #{tpu_custom_call.1} parent=47 // pred_region
          %s302 = sand.u32 %s112, 1
          %s303 = scalar_lea.sflag [#allocation4], %s302
          %s304 = sand.u32 %s112, 1
          %s305 = smul.addr %s304, 32
          %s306 = scalar_lea.vmem [#allocation7], %s305
          %308 = dma.done %s303, 512
        $region52: #{tpu_custom_call.1} parent=47 // pred_fallthru
          _
      $region48: #{tpu_custom_call.1} parent=5 // pred_fallthru
        _
    $region6: #{tpu_custom_call.1} parent=1 // loop_footer
      %s21 = sadd.s32 1, %s17
    $region7: #{tpu_custom_call.1} parent=1 // loop_footer_branch
      %16 = sbr.rel target = $region3
    $region8: #{tpu_custom_call.1} parent=1 // loop_exit
      _
    %309 = vsyncpa [#allocation3], 1
    %s310 = scalar_lea.sflag [#allocation3], 1
    %311 = vsyncpa %s310, 1
    %312 = vsyncpa [#allocation6], 1
    %s313 = scalar_lea.sflag [#allocation6], 1
    %314 = vsyncpa %s313, 1
    %315 = vsyncpa [#allocation4], 1
    %s316 = scalar_lea.sflag [#allocation4], 1
    %317 = vsyncpa %s316, 1

</llo_original>
